<compile_context>
chip_gen: v7x
topology: tpu7x:2x2x1
jax: 0.10.0
libtpu: 0.0.40
codegen_flags: <defaults>
</compile_context>

<pallas_src>
import functools

import jax
import jax.numpy as jnp
from jax.experimental import pallas as pl
from jax.experimental.pallas import tpu as pltpu

# ---- packed-parameter layout (all section starts 8-sublane aligned) --------
_H1, _H2 = 64, 32          # hidden sizes of fc1 / fc2
_PACK_COLS = 64            # lane width of the packed buffer
_W1_ROW = 0                # rows [0, F)        : w1  (F, 64)
_B1_ROW = 8                # row  8             : b1  (64,)
_W2_ROW = 16               # rows [16, 80)      : w2  (64, 32) in cols [0, 32)
_B2_ROW = 80               # row  80            : b2  (32,)    in cols [0, 32)
_W3_ROW = 88               # row  88            : w3^T (32,)   in cols [0, 32)
_B3_ROW = 96               # row  96, col 0     : b3 scalar
_PACK_ROWS = 104
_OUT_LANES = 128           # lane-dense output slab width (one full vreg row)


def titanic_mlp_kernel(x_ref, p_ref, o_ref, *, F):
    x = x_ref[...]                                     # (B, F) f32

    # Static slices into the packed parameter buffer (views, no extra DMA).
    w1 = p_ref[_W1_ROW:_W1_ROW + F, :]                 # (F, 64)
    b1 = p_ref[_B1_ROW:_B1_ROW + 1, :]                 # (1, 64)
    w2 = p_ref[_W2_ROW:_W2_ROW + _H1, 0:_H2]           # (64, 32)
    b2 = p_ref[_B2_ROW:_B2_ROW + 1, 0:_H2]             # (1, 32)
    w3 = p_ref[_W3_ROW:_W3_ROW + 1, 0:_H2]             # (1, 32)  = fc3 weight row
    b3 = p_ref[_B3_ROW:_B3_ROW + 1, 0:1]               # (1, 1)

    # fc1 + ReLU (MXU)
    h1 = jnp.maximum(
        jnp.dot(x, w1, preferred_element_type=jnp.float32) + b1, 0.0)
    # fc2 + ReLU (MXU)
    h2 = jnp.maximum(
        jnp.dot(h1, w2, preferred_element_type=jnp.float32) + b2, 0.0)
    # fc3 + Sigmoid: out_features == 1 -> VPU multiply + lane reduction
    # (avoids an MXU pass whose result is 1 lane wide).
    logits = jnp.sum(h2 * w3, axis=-1, keepdims=True) + b3   # (B, 1)
    probs = jax.nn.sigmoid(logits)                            # (B, 1)

    # Lane-dense store: fill the full 128-lane slab -> unmasked vector store.
    o_ref[...] = jnp.broadcast_to(probs, o_ref.shape)


def pack_params(params, in_features):
    """Pack w1,b1,w2,b2,w3,b3 into a single (104, 64) f32 buffer."""
    w1, b1, w2, b2, w3, b3 = (params[k] for k in ("w1", "b1", "w2", "b2", "w3", "b3"))
    p = jnp.zeros((_PACK_ROWS, _PACK_COLS), jnp.float32)
    p = p.at[_W1_ROW:_W1_ROW + in_features, :].set(w1)
    p = p.at[_B1_ROW, :].set(b1.reshape(-1))
    p = p.at[_W2_ROW:_W2_ROW + _H1, 0:_H2].set(w2)
    p = p.at[_B2_ROW, 0:_H2].set(b2.reshape(-1))
    p = p.at[_W3_ROW, 0:_H2].set(w3.reshape(-1))       # w3 is (32, 1) -> row of 32
    p = p.at[_B3_ROW, 0].set(b3.reshape(-1)[0])
    return p


def titanic_forward(x, packed_params):
    """x: (B, F) f32; packed_params: (104, 64) f32 from pack_params."""
    B, F = x.shape

    def vmem_spec(shape):
        return pl.BlockSpec(shape, lambda: (0,) * len(shape),
                            memory_space=pltpu.MemorySpace.VMEM)

    flops = 2 * B * (F * _H1 + _H1 * _H2 + _H2)
    bytes_accessed = 4 * (x.size + packed_params.size + B * _OUT_LANES)

    out = pl.pallas_call(
        functools.partial(titanic_mlp_kernel, F=F),
        out_shape=jax.ShapeDtypeStruct((B, _OUT_LANES), jnp.float32),
        grid=(),
        in_specs=[vmem_spec(x.shape), vmem_spec(packed_params.shape)],
        out_specs=vmem_spec((B, _OUT_LANES)),
        cost_estimate=pl.CostEstimate(
            flops=flops, transcendentals=B, bytes_accessed=bytes_accessed),
    )(x, packed_params)

    # Slice the padded slab back to the module's (B, 1) output.
    return out[:, :1]


def init_params(key, in_features):
    """Deterministic init mimicking nn.Linear's U(-1/sqrt(fan_in), 1/sqrt(fan_in))."""
    dims = [(in_features, _H1), (_H1, _H2), (_H2, 1)]
    params = {}
    for idx, (fan_in, fan_out) in enumerate(dims, start=1):
        key, kw, kb = jax.random.split(key, 3)
        bound = 1.0 / jnp.sqrt(jnp.float32(fan_in))
        params[f"w{idx}"] = jax.random.uniform(
            kw, (fan_in, fan_out), jnp.float32, -bound, bound)
        params[f"b{idx}"] = jax.random.uniform(
            kb, (1, fan_out), jnp.float32, -bound, bound)
    return params


def reference_forward(x, params):
    h1 = jnp.maximum(x @ params["w1"] + params["b1"], 0.0)
    h2 = jnp.maximum(h1 @ params["w2"] + params["b2"], 0.0)
    return jax.nn.sigmoid(h2 @ params["w3"] + params["b3"])


if __name__ == "__main__":
    # Titanic-style tabular input: batch=8, features=8 (standard-scaled).
    B, F = 8, 8
    key = jax.random.PRNGKey(0)
    key, kx = jax.random.split(key)
    x = jax.random.normal(kx, (B, F), jnp.float32)

    params = init_params(key, F)
    packed = pack_params(params, F)

    out = titanic_forward(x, packed)
    out = jax.block_until_ready(out)

    ref = reference_forward(x, params)
    assert out.shape == (B, 1)
    assert jnp.allclose(out, ref, atol=1e-5, rtol=1e-5), "mismatch vs reference"
    print("KERNEL_OK")
</pallas_src>

<mosaic_0001>
module attributes {stable_mosaic.version = 11 : i64} {
  func.func @titanic_mlp_kernel(%arg0: memref<8x8xf32, #tpu.memory_space<vmem>>, %arg1: memref<104x64xf32, #tpu.memory_space<vmem>>, %arg2: memref<8x128xf32, #tpu.memory_space<vmem>>) attributes {dimension_semantics = [], scalar_prefetch = 0 : i64, scratch_operands = 0 : i64, tpu.core_type = #tpu.core_type<tc>} {
    %c0 = arith.constant 0 : index
    %c0_0 = arith.constant 0 : index
    %0 = vector.load %arg0[%c0, %c0_0] : memref<8x8xf32, #tpu.memory_space<vmem>>, vector<8x8xf32>
    %c0_1 = arith.constant 0 : index
    %c0_2 = arith.constant 0 : index
    %1 = vector.load %arg1[%c0_1, %c0_2] : memref<104x64xf32, #tpu.memory_space<vmem>>, vector<8x64xf32>
    %c8 = arith.constant 8 : index
    %c0_3 = arith.constant 0 : index
    %2 = vector.load %arg1[%c8, %c0_3] : memref<104x64xf32, #tpu.memory_space<vmem>>, vector<1x64xf32>
    %c16 = arith.constant 16 : index
    %c0_4 = arith.constant 0 : index
    %3 = vector.load %arg1[%c16, %c0_4] : memref<104x64xf32, #tpu.memory_space<vmem>>, vector<64x32xf32>
    %c80 = arith.constant 80 : index
    %c0_5 = arith.constant 0 : index
    %4 = vector.load %arg1[%c80, %c0_5] : memref<104x64xf32, #tpu.memory_space<vmem>>, vector<1x32xf32>
    %c88 = arith.constant 88 : index
    %c0_6 = arith.constant 0 : index
    %5 = vector.load %arg1[%c88, %c0_6] : memref<104x64xf32, #tpu.memory_space<vmem>>, vector<1x32xf32>
    %c96 = arith.constant 96 : index
    %c0_7 = arith.constant 0 : index
    %6 = vector.load %arg1[%c96, %c0_7] : memref<104x64xf32, #tpu.memory_space<vmem>>, vector<1x1xf32>
    %cst = arith.constant dense<0.000000e+00> : vector<8x64xf32>
    %7 = tpu.matmul %0, %1, %cst {dimension_numbers = #tpu.dot_dimension_numbers<[1], [0], [0], [1], [0, 0, 1, 1], [], []>} : vector<8x8xf32>, vector<8x64xf32>, vector<8x64xf32> -> vector<8x64xf32>
    %8 = vector.broadcast %2 : vector<1x64xf32> to vector<8x64xf32>
    %9 = arith.addf %7, %8 : vector<8x64xf32>
    %cst_8 = arith.constant 0.000000e+00 : f32
    %10 = vector.broadcast %cst_8 : f32 to vector<8x64xf32>
    %11 = arith.maximumf %9, %10 : vector<8x64xf32>
    %cst_9 = arith.constant dense<0.000000e+00> : vector<8x32xf32>
    %12 = tpu.matmul %11, %3, %cst_9 {dimension_numbers = #tpu.dot_dimension_numbers<[1], [0], [0], [1], [0, 0, 1, 1], [], []>} : vector<8x64xf32>, vector<64x32xf32>, vector<8x32xf32> -> vector<8x32xf32>
    %13 = vector.broadcast %4 : vector<1x32xf32> to vector<8x32xf32>
    %14 = arith.addf %12, %13 : vector<8x32xf32>
    %cst_10 = arith.constant 0.000000e+00 : f32
    %15 = vector.broadcast %cst_10 : f32 to vector<8x32xf32>
    %16 = arith.maximumf %14, %15 : vector<8x32xf32>
    %17 = vector.broadcast %5 : vector<1x32xf32> to vector<8x32xf32>
    %18 = arith.mulf %16, %17 : vector<8x32xf32>
    %cst_11 = arith.constant dense<0.000000e+00> : vector<8xf32>
    %19 = vector.multi_reduction <add>, %18, %cst_11 [1] : vector<8x32xf32> to vector<8xf32>
    %20 = vector.shape_cast %19 : vector<8xf32> to vector<8x1xf32>
    %21 = vector.broadcast %6 : vector<1x1xf32> to vector<8x1xf32>
    %22 = arith.addf %20, %21 : vector<8x1xf32>
    %23 = arith.negf %22 : vector<8x1xf32>
    %24 = math.exp %23 : vector<8x1xf32>
    %cst_12 = arith.constant 1.000000e+00 : f32
    %25 = vector.broadcast %cst_12 : f32 to vector<8x1xf32>
    %26 = arith.addf %25, %24 : vector<8x1xf32>
    %27 = arith.divf %25, %26 : vector<8x1xf32>
    %28 = vector.shape_cast %27 : vector<8x1xf32> to vector<8x1xf32>
    %29 = vector.broadcast %28 : vector<8x1xf32> to vector<8x128xf32>
    %c0_13 = arith.constant 0 : index
    %c0_14 = arith.constant 0 : index
    %30 = vector.load %arg2[%c0_13, %c0_14] : memref<8x128xf32, #tpu.memory_space<vmem>>, vector<8x128xf32>
    tpu.vector_store %arg2[%c0_13, %c0_14], %29 {strides = array<i32>} : memref<8x128xf32, #tpu.memory_space<vmem>>, vector<8x128xf32>,
    return
  }
}

</mosaic_0001>

<llo_original>
// kernel: tpu_custom_call.1
$region0: #{tpu_custom_call.1}
  #allocation0 [shape = 'u32[]', space=smem, size = 0x4, offset = 0x4, fixed_abs, tag = 'smem constant byte address 0x4 - core index']
  #allocation1 [shape = 'u32[144,128]{1,0:T(1,128)}', space=vmem, size = 0x12000, scoped, tag = 'internal scratch']
  %s0 = inlined_call_operand.vmem [shape: f32[8,8], index: 0, kind: input, shape index: {}]
  %s1 = inlined_call_operand.vmem [shape: f32[104,64], index: 1, kind: input, shape index: {}]
  %s2 = inlined_call_operand.hbm [shape: f32[8,128], index: 2, kind: output, shape index: {}]
  %s3 = sld [smem:[#allocation0]]
  $region18: #{tpu_custom_call.1} parent=0
    _
  %s5 = ssub.s32 1, %s3
  %s6 = scalar_select 0, %s5, %s3
  $region1: #{tpu_custom_call.1} parent=0
    #allocation2 [shape = 'u8[4096]{0}', space=vmem, size = 0x1000, scoped, tag = 'output window, operand 0, single buffered']
    #allocation3 [shape = 's32[1]{0}', space=sflag, size = 0x4, scoped, tag = 'scoped memory for tpu_custom_call.1']
    %7 = vsyncpa [#allocation3], 0
    // Predicated region
    $region2: #{tpu_custom_call.1} parent=1 // pred_check
      _
    $region3: #{tpu_custom_call.1} parent=1 // pred_check_branch
      %9 = sbr.rel (0) target = $region5
    $region4: #{tpu_custom_call.1} parent=1 // pred_region
      _
    $region5: #{tpu_custom_call.1} parent=1 // pred_fallthru
      _
    // Predicated region
    $region6: #{tpu_custom_call.1} parent=1 // pred_check
      _
    $region7: #{tpu_custom_call.1} parent=1 // pred_check_branch
      %11 = sbr.rel (0) target = $region9
    $region8: #{tpu_custom_call.1} parent=1 // pred_region
      _
    $region9: #{tpu_custom_call.1} parent=1 // pred_fallthru
      _
    %v12 = vld [vmem:[%s0] sm:$0xff]
    %v13 = vld [vmem:[%s1] sm:$0xff]
    %v14 = vld [vmem:[%s1 + $0x8] sm:$0x1]
    %v15 = vld [vmem:[%s1 + $0x10] sm:$0xff]
    %v16 = vld [vmem:[%s1 + $0x18] sm:$0xff]
    %v17 = vld [vmem:[%s1 + $0x20] sm:$0xff]
    %v18 = vld [vmem:[%s1 + $0x28] sm:$0xff]
    %v19 = vld [vmem:[%s1 + $0x30] sm:$0xff]
    %v20 = vld [vmem:[%s1 + $0x38] sm:$0xff]
    %v21 = vld [vmem:[%s1 + $0x40] sm:$0xff]
    %v22 = vld [vmem:[%s1 + $0x48] sm:$0xff]
    %v23 = vld [vmem:[%s1 + $0x50] sm:$0x1]
    %v24 = vld [vmem:[%s1 + $0x58] sm:$0x1]
    %v25 = vld [vmem:[%s1 + $0x60] sm:$0x1]
    %v26 = vlaneseq
    %v27 = vshrl.u32 %v26, 7
    %v28 = vsub.s32 0, %v27
    %v29 = vrot.slane %v14, %v28
    %vm30 = vcmask 64512
    %v32 = vsel %vm30, %v12, 0
    %34 = vmatprep.subr.mxu0 0.0
    %35 = vmatpush1.msra.mxu0 %v13
    %36 = vmatprep.subr.mxu0 0.0
    %37 = vmatpush1.msra.mxu0 0.0
    %38 = vmatprep.subr.mxu0 0.0
    %39 = vmatpush1.msra.mxu0 0.0
    %40 = vmatprep.subr.mxu0 0.0
    %41 = vmatpush1.msra.mxu0 0.0
    %42 = vmatprep.subr.mxu0 0.0
    %43 = vmatpush1.msra.mxu0 0.0
    %44 = vmatprep.subr.mxu0 0.0
    %45 = vmatpush1.msra.mxu0 0.0
    %46 = vmatprep.subr.mxu0 0.0
    %47 = vmatpush1.msra.mxu0 0.0
    %48 = vmatprep.subr.mxu0 0.0
    %49 = vmatpush1.msra.mxu0 0.0
    %50 = vmatprep.subr.mxu0 0.0
    %51 = vmatpush1.msra.mxu0 0.0
    %52 = vmatprep.subr.mxu0 0.0
    %53 = vmatpush1.msra.mxu0 0.0
    %54 = vmatprep.subr.mxu0 0.0
    %55 = vmatpush1.msra.mxu0 0.0
    %56 = vmatprep.subr.mxu0 0.0
    %57 = vmatpush1.msra.mxu0 0.0
    %58 = vmatprep.subr.mxu0 0.0
    %59 = vmatpush1.msra.mxu0 0.0
    %60 = vmatprep.subr.mxu0 0.0
    %61 = vmatpush1.msra.mxu0 0.0
    %62 = vmatprep.subr.mxu0 0.0
    %63 = vmatpush1.msra.mxu0 0.0
    %64 = vmatprep.subr.mxu0 0.0
    %65 = vmatpush1.msra.mxu0 0.0
    %66 = vmatprep.subr.mxu0 0.0
    %67 = vmatpush1.msra.mxu0 0.0
    %68 = vmatprep.subr.mxu0 0.0
    %69 = vmatpush1.msra.mxu0 0.0
    %70 = vmatprep.subr.mxu0 0.0
    %71 = vmatpush1.msra.mxu0 0.0
    %72 = vmatprep.subr.mxu0 0.0
    %73 = vmatpush1.msra.mxu0 0.0
    %74 = vmatprep.subr.mxu0 0.0
    %75 = vmatpush1.msra.mxu0 0.0
    %76 = vmatprep.subr.mxu0 0.0
    %77 = vmatpush1.msra.mxu0 0.0
    %78 = vmatprep.subr.mxu0 0.0
    %79 = vmatpush1.msra.mxu0 0.0
    %80 = vmatprep.subr.mxu0 0.0
    %81 = vmatpush1.msra.mxu0 0.0
    %82 = vmatprep.subr.mxu0 0.0
    %83 = vmatpush1.msra.mxu0 0.0
    %84 = vmatprep.subr.mxu0 0.0
    %85 = vmatpush1.msra.mxu0 0.0
    %86 = vmatprep.subr.mxu0 0.0
    %87 = vmatpush1.msra.mxu0 0.0
    %88 = vmatprep.subr.mxu0 0.0
    %89 = vmatpush1.msra.mxu0 0.0
    %90 = vmatprep.subr.mxu0 0.0
    %91 = vmatpush1.msra.mxu0 0.0
    %92 = vmatprep.subr.mxu0 0.0
    %93 = vmatpush1.msra.mxu0 0.0
    %94 = vmatprep.subr.mxu0 0.0
    %95 = vmatpush1.msra.mxu0 0.0
    %96 = vmatprep.subr.mxu0 0.0
    %97 = vmatpush1.msra.mxu0 0.0
    %98 = vmatprep.mubr.f32.mxu0 0.0
    %99 = vmatmul.mubr.f32.gmra.mrb[0].mxu0 %v32
    %v100 = vpop.f32.mrb[0].mxu0
    %v101 = vadd.f32 %v29, %v100
    %v102 = vpop.f32.mrb[0].mxu0
    %103 = vdwg.mxu0
    %v104 = vmax.f32 %v101, 0.0
    %v105 = vlaneseq
    %v106 = vshrl.u32 %v105, 7
    %v107 = vsub.s32 0, %v106
    %v108 = vrot.slane %v23, %v107
    %vm109 = vcmask 523264
    %v111 = vsel %vm109, %v104, 0
    %113 = vmatprep.subr.mxu0 0.0
    %114 = vmatpush1.msra.mxu0 %v15
    %115 = vmatprep.subr.mxu0 0.0
    %116 = vmatpush1.msra.mxu0 %v16
    %117 = vmatprep.subr.mxu0 0.0
    %118 = vmatpush1.msra.mxu0 %v17
    %119 = vmatprep.subr.mxu0 0.0
    %120 = vmatpush1.msra.mxu0 %v18
    %121 = vmatprep.subr.mxu0 0.0
    %122 = vmatpush1.msra.mxu0 %v19
    %123 = vmatprep.subr.mxu0 0.0
    %124 = vmatpush1.msra.mxu0 %v20
    %125 = vmatprep.subr.mxu0 0.0
    %126 = vmatpush1.msra.mxu0 %v21
    %127 = vmatprep.subr.mxu0 0.0
    %128 = vmatpush1.msra.mxu0 %v22
    %129 = vmatprep.subr.mxu0 0.0
    %130 = vmatpush1.msra.mxu0 0.0
    %131 = vmatprep.subr.mxu0 0.0
    %132 = vmatpush1.msra.mxu0 0.0
    %133 = vmatprep.subr.mxu0 0.0
    %134 = vmatpush1.msra.mxu0 0.0
    %135 = vmatprep.subr.mxu0 0.0
    %136 = vmatpush1.msra.mxu0 0.0
    %137 = vmatprep.subr.mxu0 0.0
    %138 = vmatpush1.msra.mxu0 0.0
    %139 = vmatprep.subr.mxu0 0.0
    %140 = vmatpush1.msra.mxu0 0.0
    %141 = vmatprep.subr.mxu0 0.0
    %142 = vmatpush1.msra.mxu0 0.0
    %143 = vmatprep.subr.mxu0 0.0
    %144 = vmatpush1.msra.mxu0 0.0
    %145 = vmatprep.subr.mxu0 0.0
    %146 = vmatpush1.msra.mxu0 0.0
    %147 = vmatprep.subr.mxu0 0.0
    %148 = vmatpush1.msra.mxu0 0.0
    %149 = vmatprep.subr.mxu0 0.0
    %150 = vmatpush1.msra.mxu0 0.0
    %151 = vmatprep.subr.mxu0 0.0
    %152 = vmatpush1.msra.mxu0 0.0
    %153 = vmatprep.subr.mxu0 0.0
    %154 = vmatpush1.msra.mxu0 0.0
    %155 = vmatprep.subr.mxu0 0.0
    %156 = vmatpush1.msra.mxu0 0.0
    %157 = vmatprep.subr.mxu0 0.0
    %158 = vmatpush1.msra.mxu0 0.0
    %159 = vmatprep.subr.mxu0 0.0
    %160 = vmatpush1.msra.mxu0 0.0
    %161 = vmatprep.subr.mxu0 0.0
    %162 = vmatpush1.msra.mxu0 0.0
    %163 = vmatprep.subr.mxu0 0.0
    %164 = vmatpush1.msra.mxu0 0.0
    %165 = vmatprep.subr.mxu0 0.0
    %166 = vmatpush1.msra.mxu0 0.0
    %167 = vmatprep.subr.mxu0 0.0
    %168 = vmatpush1.msra.mxu0 0.0
    %169 = vmatprep.subr.mxu0 0.0
    %170 = vmatpush1.msra.mxu0 0.0
    %171 = vmatprep.subr.mxu0 0.0
    %172 = vmatpush1.msra.mxu0 0.0
    %173 = vmatprep.subr.mxu0 0.0
    %174 = vmatpush1.msra.mxu0 0.0
    %175 = vmatprep.subr.mxu0 0.0
    %176 = vmatpush1.msra.mxu0 0.0
    %177 = vmatprep.mubr.f32.mxu0 0.0
    %178 = vmatmul.mubr.f32.gmra.mrb[0].mxu0 %v111
    %v179 = vpop.f32.mrb[0].mxu0
    %v180 = vadd.f32 %v108, %v179
    %v181 = vpop.f32.mrb[0].mxu0
    %182 = vdwg.mxu0
    %v183 = vmax.f32 %v180, 0.0
    %v184 = vlaneseq
    %v185 = vshrl.u32 %v184, 7
    %v186 = vsub.s32 0, %v185
    %v187 = vrot.slane %v24, %v186
    %v188 = vmul.f32 %v183, %v187
    %vm189 = vcmask 261120
    %v190 = vsel %vm189, %v188, 0.0
    %191 = vadd.xlane.f32.xlu0 %v190
    %v192 = vpop.xlane.xlu0 %191
    %v193 = vlaneseq
    %v194 = vshrl.u32 %v193, 7
    %v195 = vsub.s32 0, %v194
    %v196 = vrot.slane %v25, %v195
    %v197 = vadd.f32 %v192, %v196
    %v198 = vxor.u32 %v197, 2147483648
    %v199 = vmul.f32 %v198, 1.442695
    %v200 = vpow.pop %v199
    %v201 = vadd.f32 %v200, 1.0
    %v202 = vrcp.pop %v201
    %v203 = vmul.f32 1.0, %v202
    %205 = vset.pattern.permute.xlu0 0
    %206 = vperm.xlu0 %205, %v203
    %v207 = vpop.permute.xlu0 %206
    %209 = vst [vmem:[#allocation2] sm:$0xff] %v207
    // Predicated region
    $region10: #{tpu_custom_call.1} parent=1 // pred_check
      _
    $region11: #{tpu_custom_call.1} parent=1 // pred_check_branch
      %211 = sbr.rel (0) target = $region13
    $region12: #{tpu_custom_call.1} parent=1 // pred_region
      %s213 = ssub.s32 128, 128
      %214 = vsyncadd [#allocation3], %s213
      %s216 = sshll.u32 [#allocation2], 4
      %s217 = int_to_ptr.vmem [resolvable:$true] %s216
      %219 = dma.vmem_to_hbm [thread:$0]  %s217, 128, %s2, [#allocation3]
    $region13: #{tpu_custom_call.1} parent=1 // pred_fallthru
      _
    // Predicated region
    $region14: #{tpu_custom_call.1} parent=1 // pred_check
      _
    $region15: #{tpu_custom_call.1} parent=1 // pred_check_branch
      %221 = sbr.rel (0) target = $region17
    $region16: #{tpu_custom_call.1} parent=1 // pred_region
      %222 = dma.done [#allocation3], 128
    $region17: #{tpu_custom_call.1} parent=1 // pred_fallthru
      _
    %223 = vsyncpa [#allocation3], 1

</llo_original>
